<compile_context>
chip_gen: v7x
topology: tpu7x:2x2x1
jax: 0.10.0
libtpu: 0.0.40
codegen_flags: <defaults>
</compile_context>

<pallas_src>
import functools

import jax
import jax.numpy as jnp
from jax.experimental import pallas as pl
from jax.experimental.pallas import tpu as pltpu


def _round_up(x: int, m: int) -> int:
    return ((x + m - 1) // m) * m


def _vmem_capacity_bytes() -> int:
    """Physical VMEM per TensorCore; conservative fallback if query fails."""
    try:
        info = pltpu.get_tpu_info()
        cap = getattr(info, "vmem_capacity_bytes", None)
        if cap:
            return int(cap)
    except Exception:
        pass
    return 64 * 1024 * 1024  # v7x per-TC VMEM (smallest of v5e/v6e/v7x)


def _vmem_bytes(block_b, block_f, d_in, h_p, bpe, out_bpe, has_feedback):
    """Estimate kernel VMEM: resident blocks counted 2x (default double-buffer)."""
    resident = 2 * (d_in * h_p * bpe + h_p * 4)                  # W1, b1
    streamed = 2 * (h_p * block_f * bpe + block_f * 4            # W2, b2 tiles
                    + block_b * d_in * bpe                        # cond tile
                    + block_b * block_f * out_bpe)                # out tile
    if has_feedback:
        streamed += 2 * block_b * h_p * 4                         # feedback (f32)
    scratch = block_b * h_p * bpe                                 # h scratch
    return resident + streamed + scratch


def _generator_kernel(*refs, use_sigmoid: bool, has_feedback: bool):
    """Grid (batch tile i, output-column tile j).

    j == 0: fc1 + bias + LeakyReLU(0.2) (+ feedback) -> h scratch (per batch tile)
    every j: fc2 column block + bias + activation -> out tile
    """
    if has_feedback:
        (cond_ref, w1_ref, b1_ref, w2_ref, b2_ref,
         fb_ref, fbw_ref, out_ref, h_ref) = refs
    else:
        cond_ref, w1_ref, b1_ref, w2_ref, b2_ref, out_ref, h_ref = refs
        fb_ref = fbw_ref = None

    @pl.when(pl.program_id(1) == 0)
    def _():
        h = jnp.dot(cond_ref[...], w1_ref[...],
                    preferred_element_type=jnp.float32)
        h = h + b1_ref[...]                      # bias already f32
        h = jnp.where(h > 0, h, 0.2 * h)         # LeakyReLU(0.2)
        if has_feedback:
            h = h + fbw_ref[0] * fb_ref[...]     # SMEM scalar * f32 stream
        h_ref[...] = h.astype(h_ref.dtype)

    y = jnp.dot(h_ref[...], w2_ref[...], preferred_element_type=jnp.float32)
    y = y + b2_ref[...]
    y = jax.nn.sigmoid(y) if use_sigmoid else jnp.maximum(y, 0.0)
    out_ref[...] = y.astype(out_ref.dtype)


def prepare_generator_params(w1, b1, w2, b2, *, use_sigmoid: bool = False,
                             compute_dtype=jnp.bfloat16, block_f=None):
    """One-time weight prep: pad to lane granules, cast once, pick F tiling.

    Layout: W1 (A+Z, H), W2 (H, F) (PyTorch weights pre-transposed so the
    kernel does plain `x @ W`).  Call once and reuse across forward calls.
    """
    d_in, hidden = w1.shape
    hidden2, n_feat = w2.shape
    assert hidden == hidden2, "weight shapes inconsistent"

    h_p = _round_up(hidden, 128)
    bpe = jnp.dtype(compute_dtype).itemsize
    cap = _vmem_capacity_bytes()
    budget = (cap * 3) // 4  # ~48 MiB on v7x, ~96 MiB on v5e/v6e

    # Column-tile width for W2 streaming (worst case: block_b=256, f32 out,
    # feedback on).  Single tile (== resident W2) whenever it fits.
    if block_f is None:
        block_f = _round_up(n_feat, 128)
        while (block_f > 128 and
               _vmem_bytes(256, block_f, d_in, h_p, bpe, 4, True) > budget):
            block_f = _round_up(max(128, block_f // 2), 128)
    f_p = _round_up(n_feat, block_f)

    f32 = jnp.float32
    w1_p = jnp.zeros((d_in, h_p), compute_dtype).at[:, :hidden].set(
        w1.astype(compute_dtype))
    b1_p = jnp.zeros((1, h_p), f32).at[:, :hidden].set(
        jnp.reshape(b1, (1, hidden)).astype(f32))
    w2_p = jnp.zeros((h_p, f_p), compute_dtype).at[:hidden, :n_feat].set(
        w2.astype(compute_dtype))
    b2_p = jnp.zeros((1, f_p), f32).at[:, :n_feat].set(
        jnp.reshape(b2, (1, n_feat)).astype(f32))

    return dict(w1=w1_p, b1=b1_p, w2=w2_p, b2=b2_p,
                d_in=d_in, hidden=hidden, n_feat=n_feat,
                h_p=h_p, f_p=f_p, block_f=block_f,
                compute_dtype=compute_dtype, use_sigmoid=use_sigmoid,
                vmem_cap=cap, vmem_budget=budget)


def generator_forward(params, cond, feedback_weight=None, feedback=None,
                      out_dtype=jnp.float32, block_b: int | None = None):
    """Fused Generator forward pass on TPU via Pallas."""
    if feedback is not None and feedback_weight is None:
        raise ValueError("feedback_weight must be given when feedback is provided")
    has_fb = feedback is not None

    d_in, hidden = params["d_in"], params["hidden"]
    h_p, f_p, block_f = params["h_p"], params["f_p"], params["block_f"]
    n_feat = params["n_feat"]
    compute_dtype = params["compute_dtype"]
    use_sigmoid = params["use_sigmoid"]
    budget, cap = params["vmem_budget"], params["vmem_cap"]

    B, d_in_c = cond.shape
    assert d_in_c == d_in, "cond feature dim inconsistent with weights"

    bpe = jnp.dtype(compute_dtype).itemsize
    out_bpe = jnp.dtype(out_dtype).itemsize
    granule = 16 if bpe < 4 else 8  # bf16 packs 16 rows per sublane group

    if block_b is None:
        block_b = min(256, _round_up(B, granule))
        # Megacore (v7x): if one tile would cover all of B and B is large,
        # split into >= 2 batch tiles so both TensorCores get work.
        if _round_up(B, block_b) // block_b < 2 and block_b >= 256:
            block_b = _round_up(block_b // 2, granule)
        while (block_b > granule and
               _vmem_bytes(block_b, block_f, d_in, h_p, bpe, out_bpe, has_fb)
               > budget):
            block_b = _round_up(max(granule, block_b // 2), granule)
    b_p = _round_up(B, block_b)
    grid_b = b_p // block_b
    grid_f = f_p // block_f

    # Per-call padding only for the streamed activations (weights are prepped).
    if b_p == B and cond.dtype == compute_dtype:
        cond_p = cond
    else:
        cond_p = jnp.zeros((b_p, d_in), compute_dtype).at[:B, :].set(
            cond.astype(compute_dtype))

    inputs = [cond_p, params["w1"], params["b1"], params["w2"], params["b2"]]
    in_specs = [
        pl.BlockSpec((block_b, d_in), lambda i, j: (i, 0)),   # cond (streamed)
        pl.BlockSpec((d_in, h_p), lambda i, j: (0, 0)),       # W1 (resident)
        pl.BlockSpec((1, h_p), lambda i, j: (0, 0)),          # b1 (resident)
        pl.BlockSpec((h_p, block_f), lambda i, j: (0, j)),    # W2 (column stream)
        pl.BlockSpec((1, block_f), lambda i, j: (0, j)),      # b2 (column stream)
    ]
    if has_fb:
        fb_p = jnp.zeros((b_p, h_p), jnp.float32).at[:B, :hidden].set(
            feedback.astype(jnp.float32))
        fbw = jnp.reshape(jnp.asarray(feedback_weight, jnp.float32), (1,))
        inputs += [fb_p, fbw]
        in_specs += [
            pl.BlockSpec((block_b, h_p), lambda i, j: (i, 0)),           # feedback
            pl.BlockSpec(memory_space=pltpu.MemorySpace.SMEM),           # scalar
        ]

    kernel = functools.partial(_generator_kernel,
                               use_sigmoid=use_sigmoid,
                               has_feedback=has_fb)

    vmem_est = _vmem_bytes(block_b, block_f, d_in, h_p, bpe, out_bpe, has_fb)
    vmem_limit = int(min(int(cap * 0.9),
                         max(int(vmem_est * 1.25) + (4 << 20), 32 << 20)))

    out_p = pl.pallas_call(
        kernel,
        out_shape=jax.ShapeDtypeStruct((b_p, f_p), out_dtype),
        grid=(grid_b, grid_f),
        in_specs=in_specs,
        out_specs=pl.BlockSpec((block_b, block_f), lambda i, j: (i, j)),
        scratch_shapes=[pltpu.VMEM((block_b, h_p), compute_dtype)],  # h cache
        compiler_params=pltpu.CompilerParams(
            dimension_semantics=("parallel", "arbitrary"),
            vmem_limit_bytes=vmem_limit,
        ),
    )(*inputs)

    return out_p[:B, :n_feat]


def init_generator_params(key, n_features, n_attributes, latent_size,
                          hidden_size):
    """Deterministic init mirroring init_weights: W ~ N(0, 0.02), b = 0."""
    d_in = n_attributes + latent_size
    k1, k2 = jax.random.split(key)
    w1 = 0.02 * jax.random.normal(k1, (d_in, hidden_size), jnp.float32)
    b1 = jnp.zeros((1, hidden_size), jnp.float32)
    w2 = 0.02 * jax.random.normal(k2, (hidden_size, n_features), jnp.float32)
    b2 = jnp.zeros((1, n_features), jnp.float32)
    return w1, b1, w2, b2


if __name__ == "__main__":
    # Small shapes consistent with the module.
    B = 8
    n_attributes = 16
    latent_size = 16
    hidden_size = 128
    n_features = 64

    key = jax.random.PRNGKey(0)
    kp, kc, kz, kf = jax.random.split(key, 4)

    w1, b1, w2, b2 = init_generator_params(
        kp, n_features, n_attributes, latent_size, hidden_size)

    # cond = concat(attributes, noise) along the feature axis
    attrs = jax.random.normal(kc, (B, n_attributes), jnp.float32)
    noise = jax.random.normal(kz, (B, latent_size), jnp.float32)
    cond = jnp.concatenate([attrs, noise], axis=1)
    feedback = jax.random.normal(kf, (B, hidden_size), jnp.float32)

    # Pure-JAX reference.
    def ref(cond, feedback=None, feedback_weight=None, use_sigmoid=False):
        h = cond @ w1 + b1
        h = jnp.where(h > 0, h, 0.2 * h)
        if feedback is not None:
            h = h + feedback_weight * feedback
        y = h @ w2 + b2
        return jax.nn.sigmoid(y) if use_sigmoid else jnp.maximum(y, 0.0)

    # --- f32 compute path (tight tolerance) -------------------------------
    params_f32 = prepare_generator_params(w1, b1, w2, b2,
                                          compute_dtype=jnp.float32)

    out = jax.block_until_ready(generator_forward(params_f32, cond))
    assert out.shape == (B, n_features)
    assert jnp.allclose(out, ref(cond), atol=1e-5)

    out_fb = jax.block_until_ready(
        generator_forward(params_f32, cond, feedback_weight=0.5,
                          feedback=feedback))
    assert jnp.allclose(out_fb, ref(cond, feedback, 0.5), atol=1e-5)

    # Different feedback_weight value: runtime SMEM scalar, same kernel.
    out_fb2 = jax.block_until_ready(
        generator_forward(params_f32, cond, feedback_weight=-1.25,
                          feedback=feedback))
    assert jnp.allclose(out_fb2, ref(cond, feedback, -1.25), atol=1e-5)

    # Sigmoid head.
    params_sig = prepare_generator_params(w1, b1, w2, b2, use_sigmoid=True,
                                          compute_dtype=jnp.float32)
    out_sig = jax.block_until_ready(generator_forward(params_sig, cond))
    assert jnp.allclose(out_sig, ref(cond, use_sigmoid=True), atol=1e-5)

    # --- default bf16 compute (MXU-native), f32 accumulate ----------------
    params_bf16 = prepare_generator_params(w1, b1, w2, b2)
    out_bf = jax.block_until_ready(
        generator_forward(params_bf16, cond, feedback_weight=0.5,
                          feedback=feedback, out_dtype=jnp.bfloat16))
    assert out_bf.shape == (B, n_features) and out_bf.dtype == jnp.bfloat16
    assert jnp.max(jnp.abs(out_bf.astype(jnp.float32)
                           - ref(cond, feedback, 0.5))) < 2e-2

    print("KERNEL_OK")
</pallas_src>

<mosaic_0001>
module attributes {stable_mosaic.version = 11 : i64} {
  func.func @_generator_kernel(%arg0: i32, %arg1: i32, %arg2: memref<8x32xf32, #tpu.memory_space<vmem>>, %arg3: memref<32x128xf32, #tpu.memory_space<vmem>>, %arg4: memref<1x128xf32, #tpu.memory_space<vmem>>, %arg5: memref<128x128xf32, #tpu.memory_space<vmem>>, %arg6: memref<1x128xf32, #tpu.memory_space<vmem>>, %arg7: memref<8x128xf32, #tpu.memory_space<vmem>>, %arg8: memref<8x128xf32, #tpu.memory_space<vmem>>) attributes {dimension_semantics = [#tpu.dimension_semantics<parallel>, #tpu.dimension_semantics<arbitrary>], iteration_bounds = array<i64: 1, 1>, scalar_prefetch = 0 : i64, scratch_operands = 1 : i64, tpu.core_type = #tpu.core_type<tc>, window_params = [{transform_indices = @transform_0, window_bounds = array<i64: 8, 32>}, {pipeline_mode = #tpu.pipeline_mode<synchronous>, transform_indices = @transform_1, window_bounds = array<i64: 32, 128>}, {pipeline_mode = #tpu.pipeline_mode<synchronous>, transform_indices = @transform_2, window_bounds = array<i64: 1, 128>}, {transform_indices = @transform_3, window_bounds = array<i64: 128, 128>}, {transform_indices = @transform_4, window_bounds = array<i64: 1, 128>}, {transform_indices = @transform_5, window_bounds = array<i64: 8, 128>}]} {
    %c0_i32 = arith.constant 0 : i32
    %0 = arith.cmpi eq, %arg1, %c0_i32 : i32
    %1 = arith.extui %0 : i1 to i32
    %c0_i32_0 = arith.constant 0 : i32
    %2 = arith.cmpi ne, %1, %c0_i32_0 : i32
    scf.if %2 {
      %c0_9 = arith.constant 0 : index
      %c0_10 = arith.constant 0 : index
      %12 = vector.load %arg2[%c0_9, %c0_10] : memref<8x32xf32, #tpu.memory_space<vmem>>, vector<8x32xf32>
      %c0_11 = arith.constant 0 : index
      %c0_12 = arith.constant 0 : index
      %13 = vector.load %arg3[%c0_11, %c0_12] : memref<32x128xf32, #tpu.memory_space<vmem>>, vector<32x128xf32>
      %cst_13 = arith.constant dense<0.000000e+00> : vector<8x128xf32>
      %14 = tpu.matmul %12, %13, %cst_13 {dimension_numbers = #tpu.dot_dimension_numbers<[1], [0], [0], [1], [0, 0, 1, 1], [], []>} : vector<8x32xf32>, vector<32x128xf32>, vector<8x128xf32> -> vector<8x128xf32>
      %c0_14 = arith.constant 0 : index
      %c0_15 = arith.constant 0 : index
      %15 = vector.load %arg4[%c0_14, %c0_15] : memref<1x128xf32, #tpu.memory_space<vmem>>, vector<1x128xf32>
      %16 = vector.broadcast %15 : vector<1x128xf32> to vector<8x128xf32>
      %17 = arith.addf %14, %16 : vector<8x128xf32>
      %cst_16 = arith.constant 0.000000e+00 : f32
      %18 = vector.broadcast %cst_16 : f32 to vector<8x128xf32>
      %19 = arith.cmpf ogt, %17, %18 : vector<8x128xf32>
      %cst_17 = arith.constant 2.000000e-01 : f32
      %20 = vector.broadcast %cst_17 : f32 to vector<8x128xf32>
      %21 = arith.mulf %20, %17 : vector<8x128xf32>
      %22 = arith.select %19, %17, %21 : vector<8x128xi1>, vector<8x128xf32>
      %c0_18 = arith.constant 0 : index
      %c0_19 = arith.constant 0 : index
      %23 = vector.load %arg8[%c0_18, %c0_19] : memref<8x128xf32, #tpu.memory_space<vmem>>, vector<8x128xf32>
      tpu.vector_store %arg8[%c0_18, %c0_19], %22 {strides = array<i32>} : memref<8x128xf32, #tpu.memory_space<vmem>>, vector<8x128xf32>,
    } else {
    }
    %c0 = arith.constant 0 : index
    %c0_1 = arith.constant 0 : index
    %3 = vector.load %arg8[%c0, %c0_1] : memref<8x128xf32, #tpu.memory_space<vmem>>, vector<8x128xf32>
    %c0_2 = arith.constant 0 : index
    %c0_3 = arith.constant 0 : index
    %4 = vector.load %arg5[%c0_2, %c0_3] : memref<128x128xf32, #tpu.memory_space<vmem>>, vector<128x128xf32>
    %cst = arith.constant dense<0.000000e+00> : vector<8x128xf32>
    %5 = tpu.matmul %3, %4, %cst {dimension_numbers = #tpu.dot_dimension_numbers<[1], [0], [0], [1], [0, 0, 1, 1], [], []>} : vector<8x128xf32>, vector<128x128xf32>, vector<8x128xf32> -> vector<8x128xf32>
    %c0_4 = arith.constant 0 : index
    %c0_5 = arith.constant 0 : index
    %6 = vector.load %arg6[%c0_4, %c0_5] : memref<1x128xf32, #tpu.memory_space<vmem>>, vector<1x128xf32>
    %7 = vector.broadcast %6 : vector<1x128xf32> to vector<8x128xf32>
    %8 = arith.addf %5, %7 : vector<8x128xf32>
    %cst_6 = arith.constant 0.000000e+00 : f32
    %9 = vector.broadcast %cst_6 : f32 to vector<8x128xf32>
    %10 = arith.maximumf %8, %9 : vector<8x128xf32>
    %c0_7 = arith.constant 0 : index
    %c0_8 = arith.constant 0 : index
    %11 = vector.load %arg7[%c0_7, %c0_8] : memref<8x128xf32, #tpu.memory_space<vmem>>, vector<8x128xf32>
    tpu.vector_store %arg7[%c0_7, %c0_8], %10 {strides = array<i32>} : memref<8x128xf32, #tpu.memory_space<vmem>>, vector<8x128xf32>,
    return
  }
  func.func @transform_0(%arg0: i32, %arg1: i32) -> (i32, i32) {
    %c0_i32 = arith.constant 0 : i32
    %c0_i32_0 = arith.constant 0 : i32
    return %arg0, %c0_i32 : i32, i32
  }
  func.func @transform_1(%arg0: i32, %arg1: i32) -> (i32, i32) {
    %c0_i32 = arith.constant 0 : i32
    %c0_i32_0 = arith.constant 0 : i32
    %c0_i32_1 = arith.constant 0 : i32
    return %c0_i32, %c0_i32_0 : i32, i32
  }
  func.func @transform_2(%arg0: i32, %arg1: i32) -> (i32, i32) {
    %c0_i32 = arith.constant 0 : i32
    %c0_i32_0 = arith.constant 0 : i32
    %c0_i32_1 = arith.constant 0 : i32
    return %c0_i32, %c0_i32_0 : i32, i32
  }
  func.func @transform_3(%arg0: i32, %arg1: i32) -> (i32, i32) {
    %c0_i32 = arith.constant 0 : i32
    %c0_i32_0 = arith.constant 0 : i32
    return %c0_i32, %arg1 : i32, i32
  }
  func.func @transform_4(%arg0: i32, %arg1: i32) -> (i32, i32) {
    %c0_i32 = arith.constant 0 : i32
    %c0_i32_0 = arith.constant 0 : i32
    return %c0_i32, %arg1 : i32, i32
  }
  func.func @transform_5(%arg0: i32, %arg1: i32) -> (i32, i32) {
    %c0_i32 = arith.constant 0 : i32
    return %arg0, %arg1 : i32, i32
  }
}

</mosaic_0001>

<llo_original>
// kernel: tpu_custom_call.1
$region0: #{tpu_custom_call.1}
  #allocation0 [shape = 'u32[]', space=smem, size = 0x4, offset = 0x4, fixed_abs, tag = 'smem constant byte address 0x4 - core index']
  #allocation1 [shape = 'u32[144,128]{1,0:T(1,128)}', space=vmem, size = 0x12000, scoped, tag = 'internal scratch']
  #allocation2 [shape = 'f32[8,128]{1,0:T(8,128)}', space=vmem, size = 0x1000, scoped, tag = 'scratch operand']
  %s0 = inlined_call_operand.hbm [shape: f32[8,32], index: 0, kind: input, shape index: {}]
  %s1 = inlined_call_operand.hbm [shape: f32[32,128], index: 1, kind: input, shape index: {}]
  %s2 = inlined_call_operand.vmem [shape: f32[1,128], index: 2, kind: input, shape index: {}]
  %s3 = inlined_call_operand.hbm [shape: f32[128,128], index: 3, kind: input, shape index: {}]
  %s4 = inlined_call_operand.vmem [shape: f32[1,128], index: 4, kind: input, shape index: {}]
  %s5 = inlined_call_operand.hbm [shape: f32[8,128], index: 5, kind: output, shape index: {}]
  %s6 = sld [smem:[#allocation0]]
  $region46: #{tpu_custom_call.1} parent=0
    _
  %s8 = ssub.s32 1, %s6
  %s9 = scalar_select 0, %s8, %s6
  $region1: #{tpu_custom_call.1} parent=0
    #allocation3 [shape = 'u8[4096]{0}', space=vmem, size = 0x1000, scoped, tag = 'input window, operand 0, single buffered']
    #allocation4 [shape = 's32[1]{0}', space=sflag, size = 0x4, scoped, tag = 'scoped memory for tpu_custom_call.1']
    #allocation5 [shape = 's32[1]{0}', space=sflag, size = 0x4, scoped, tag = 'scoped memory for tpu_custom_call.1']
    #allocation6 [shape = 'u8[16384]{0}', space=vmem, size = 0x4000, scoped, tag = 'input window, operand 1, single buffered']
    #allocation7 [shape = 's32[1]{0}', space=sflag, size = 0x4, scoped, tag = 'scoped memory for tpu_custom_call.1']
    #allocation8 [shape = 'u8[65536]{0}', space=vmem, size = 0x10000, scoped, tag = 'input window, operand 3, single buffered']
    #allocation9 [shape = 'u8[4096]{0}', space=vmem, size = 0x1000, scoped, tag = 'output window, operand 0, single buffered']
    %10 = vsyncpa [#allocation4], 0
    %11 = vsyncpa [#allocation7], 0
    %12 = vsyncpa [#allocation5], 0
    // Predicated region
    $region2: #{tpu_custom_call.1} parent=1 // pred_check
      _
    $region3: #{tpu_custom_call.1} parent=1 // pred_check_branch
      %14 = sbr.rel (0) target = $region5
    $region4: #{tpu_custom_call.1} parent=1 // pred_region
      %s16 = ssub.s32 128, 128
      %17 = vsyncadd [#allocation4], %s16
      %s19 = sshll.u32 [#allocation3], 4
      %s20 = int_to_ptr.vmem [resolvable:$true] %s19
      %22 = dma.hbm_to_vmem [thread:$0]  %s0, 128, %s20, [#allocation4]
    $region5: #{tpu_custom_call.1} parent=1 // pred_fallthru
      _
    // Predicated region
    $region6: #{tpu_custom_call.1} parent=1 // pred_check
      _
    $region7: #{tpu_custom_call.1} parent=1 // pred_check_branch
      %24 = sbr.rel (0) target = $region9
    $region8: #{tpu_custom_call.1} parent=1 // pred_region
      %s26 = ssub.s32 512, 512
      %27 = vsyncadd [#allocation7], %s26
      %s28 = sshll.u32 [#allocation6], 4
      %s29 = int_to_ptr.vmem [resolvable:$true] %s28
      %34 = dma.hbm_to_vmem [thread:$0]  %s1, 512, %s29, [#allocation7], 128, 128, 8
    $region9: #{tpu_custom_call.1} parent=1 // pred_fallthru
      _
    // Predicated region
    $region10: #{tpu_custom_call.1} parent=1 // pred_check
      _
    $region11: #{tpu_custom_call.1} parent=1 // pred_check_branch
      %36 = sbr.rel (0) target = $region13
    $region12: #{tpu_custom_call.1} parent=1 // pred_region
      _
    $region13: #{tpu_custom_call.1} parent=1 // pred_fallthru
      _
    // Predicated region
    $region14: #{tpu_custom_call.1} parent=1 // pred_check
      _
    $region15: #{tpu_custom_call.1} parent=1 // pred_check_branch
      %38 = sbr.rel (0) target = $region17
    $region16: #{tpu_custom_call.1} parent=1 // pred_region
      %s40 = ssub.s32 2048, 2048
      %41 = vsyncadd [#allocation7], %s40
      %s42 = sshll.u32 [#allocation8], 4
      %s43 = int_to_ptr.vmem [resolvable:$true] %s42
      %48 = dma.hbm_to_vmem [thread:$0]  %s3, 2048, %s43, [#allocation7], 128, 128, 8
    $region17: #{tpu_custom_call.1} parent=1 // pred_fallthru
      _
    // Predicated region
    $region18: #{tpu_custom_call.1} parent=1 // pred_check
      _
    $region19: #{tpu_custom_call.1} parent=1 // pred_check_branch
      %50 = sbr.rel (0) target = $region21
    $region20: #{tpu_custom_call.1} parent=1 // pred_region
      _
    $region21: #{tpu_custom_call.1} parent=1 // pred_fallthru
      _
    // Predicated region
    $region22: #{tpu_custom_call.1} parent=1 // pred_check
      _
    $region23: #{tpu_custom_call.1} parent=1 // pred_check_branch
      %52 = sbr.rel (0) target = $region25
    $region24: #{tpu_custom_call.1} parent=1 // pred_region
      %53 = dma.done [#allocation4], 128
    $region25: #{tpu_custom_call.1} parent=1 // pred_fallthru
      _
    // Predicated region
    $region26: #{tpu_custom_call.1} parent=1 // pred_check
      _
    $region27: #{tpu_custom_call.1} parent=1 // pred_check_branch
      %55 = sbr.rel (0) target = $region29
    $region28: #{tpu_custom_call.1} parent=1 // pred_region
      %56 = dma.done [#allocation7], 512
    $region29: #{tpu_custom_call.1} parent=1 // pred_fallthru
      _
    // Predicated region
    $region30: #{tpu_custom_call.1} parent=1 // pred_check
      _
    $region31: #{tpu_custom_call.1} parent=1 // pred_check_branch
      %58 = sbr.rel (0) target = $region33
    $region32: #{tpu_custom_call.1} parent=1 // pred_region
      %59 = dma.done [#allocation7], 2048
    $region33: #{tpu_custom_call.1} parent=1 // pred_fallthru
      _
    %p60 = scmp.eq.s32.totalorder 0, 0
    // Predicated region
    $region34: #{tpu_custom_call.1} parent=1 // pred_check
      %p61 = pneg %p60
    $region35: #{tpu_custom_call.1} parent=1 // pred_check_branch
      %63 = sbr.rel (%p61) target = $region37
    $region36: #{tpu_custom_call.1} parent=1 // pred_region
      %v64 = vld [vmem:[#allocation3] sm:$0xff]
      %v65 = vld [vmem:[#allocation6] sm:$0xff]
      %v66 = vld [vmem:[#allocation6 + $0x8] sm:$0xff]
      %v67 = vld [vmem:[#allocation6 + $0x10] sm:$0xff]
      %v68 = vld [vmem:[#allocation6 + $0x18] sm:$0xff]
      %v69 = vld [vmem:[%s2] sm:$0x1]
      %v71 = vlaneseq
      %v72 = vshrl.u32 %v71, 7
      %v73 = vsub.s32 0, %v72
      %v74 = vrot.slane %v69, %v73
      %vm76 = vcmask 261120
      %v78 = vsel %vm76, %v64, 0
      %80 = vmatprep.subr.mxu0 0.0
      %81 = vmatpush1.msra.mxu0 %v65
      %82 = vmatprep.subr.mxu0 0.0
      %83 = vmatpush1.msra.mxu0 %v66
      %84 = vmatprep.subr.mxu0 0.0
      %85 = vmatpush1.msra.mxu0 %v67
      %86 = vmatprep.subr.mxu0 0.0
      %87 = vmatpush1.msra.mxu0 %v68
      %88 = vmatprep.subr.mxu0 0.0
      %89 = vmatpush1.msra.mxu0 0.0
      %90 = vmatprep.subr.mxu0 0.0
      %91 = vmatpush1.msra.mxu0 0.0
      %92 = vmatprep.subr.mxu0 0.0
      %93 = vmatpush1.msra.mxu0 0.0
      %94 = vmatprep.subr.mxu0 0.0
      %95 = vmatpush1.msra.mxu0 0.0
      %96 = vmatprep.subr.mxu0 0.0
      %97 = vmatpush1.msra.mxu0 0.0
      %98 = vmatprep.subr.mxu0 0.0
      %99 = vmatpush1.msra.mxu0 0.0
      %100 = vmatprep.subr.mxu0 0.0
      %101 = vmatpush1.msra.mxu0 0.0
      %102 = vmatprep.subr.mxu0 0.0
      %103 = vmatpush1.msra.mxu0 0.0
      %104 = vmatprep.subr.mxu0 0.0
      %105 = vmatpush1.msra.mxu0 0.0
      %106 = vmatprep.subr.mxu0 0.0
      %107 = vmatpush1.msra.mxu0 0.0
      %108 = vmatprep.subr.mxu0 0.0
      %109 = vmatpush1.msra.mxu0 0.0
      %110 = vmatprep.subr.mxu0 0.0
      %111 = vmatpush1.msra.mxu0 0.0
      %112 = vmatprep.subr.mxu0 0.0
      %113 = vmatpush1.msra.mxu0 0.0
      %114 = vmatprep.subr.mxu0 0.0
      %115 = vmatpush1.msra.mxu0 0.0
      %116 = vmatprep.subr.mxu0 0.0
      %117 = vmatpush1.msra.mxu0 0.0
      %118 = vmatprep.subr.mxu0 0.0
      %119 = vmatpush1.msra.mxu0 0.0
      %120 = vmatprep.subr.mxu0 0.0
      %121 = vmatpush1.msra.mxu0 0.0
      %122 = vmatprep.subr.mxu0 0.0
      %123 = vmatpush1.msra.mxu0 0.0
      %124 = vmatprep.subr.mxu0 0.0
      %125 = vmatpush1.msra.mxu0 0.0
      %126 = vmatprep.subr.mxu0 0.0
      %127 = vmatpush1.msra.mxu0 0.0
      %128 = vmatprep.subr.mxu0 0.0
      %129 = vmatpush1.msra.mxu0 0.0
      %130 = vmatprep.subr.mxu0 0.0
      %131 = vmatpush1.msra.mxu0 0.0
      %132 = vmatprep.subr.mxu0 0.0
      %133 = vmatpush1.msra.mxu0 0.0
      %134 = vmatprep.subr.mxu0 0.0
      %135 = vmatpush1.msra.mxu0 0.0
      %136 = vmatprep.subr.mxu0 0.0
      %137 = vmatpush1.msra.mxu0 0.0
      %138 = vmatprep.subr.mxu0 0.0
      %139 = vmatpush1.msra.mxu0 0.0
      %140 = vmatprep.subr.mxu0 0.0
      %141 = vmatpush1.msra.mxu0 0.0
      %142 = vmatprep.subr.mxu0 0.0
      %143 = vmatpush1.msra.mxu0 0.0
      %144 = vmatprep.mubr.f32.mxu0 0.0
      %145 = vmatmul.mubr.f32.gmra.mrb[0].mxu0 %v78
      %v146 = vpop.f32.mrb[0].mxu0
      %v147 = vadd.f32 %v74, %v146
      %v148 = vpop.f32.mrb[0].mxu0
      %149 = vdwg.mxu0
      %vm150 = vcmp.gt.f32.partialorder %v147, 0.0
      %v151 = vmul.f32 %v147, 0.2
      %v152 = vsel %vm150, %v147, %v151
      %153 = vst [vmem:[#allocation2] sm:$0xff] %v152
    $region37: #{tpu_custom_call.1} parent=1 // pred_fallthru
      _
    %v154 = vld [vmem:[#allocation2] sm:$0xff]
    %v155 = vld [vmem:[#allocation8] sm:$0xff]
    %v156 = vld [vmem:[#allocation8 + $0x8] sm:$0xff]
    %v157 = vld [vmem:[#allocation8 + $0x10] sm:$0xff]
    %v158 = vld [vmem:[#allocation8 + $0x18] sm:$0xff]
    %v159 = vld [vmem:[#allocation8 + $0x20] sm:$0xff]
    %v160 = vld [vmem:[#allocation8 + $0x28] sm:$0xff]
    %v161 = vld [vmem:[#allocation8 + $0x30] sm:$0xff]
    %v162 = vld [vmem:[#allocation8 + $0x38] sm:$0xff]
    %v163 = vld [vmem:[#allocation8 + $0x40] sm:$0xff]
    %v164 = vld [vmem:[#allocation8 + $0x48] sm:$0xff]
    %v165 = vld [vmem:[#allocation8 + $0x50] sm:$0xff]
    %v166 = vld [vmem:[#allocation8 + $0x58] sm:$0xff]
    %v167 = vld [vmem:[#allocation8 + $0x60] sm:$0xff]
    %v168 = vld [vmem:[#allocation8 + $0x68] sm:$0xff]
    %v169 = vld [vmem:[#allocation8 + $0x70] sm:$0xff]
    %v170 = vld [vmem:[#allocation8 + $0x78] sm:$0xff]
    %v171 = vld [vmem:[%s4] sm:$0x1]
    %v173 = vlaneseq
    %v174 = vshrl.u32 %v173, 7
    %v175 = vsub.s32 0, %v174
    %v176 = vrot.slane %v171, %v175
    %178 = vmatprep.subr.mxu0 0.0
    %179 = vmatpush1.msra.mxu0 %v155
    %180 = vmatprep.subr.mxu0 0.0
    %181 = vmatpush1.msra.mxu0 %v156
    %182 = vmatprep.subr.mxu0 0.0
    %183 = vmatpush1.msra.mxu0 %v157
    %184 = vmatprep.subr.mxu0 0.0
    %185 = vmatpush1.msra.mxu0 %v158
    %186 = vmatprep.subr.mxu0 0.0
    %187 = vmatpush1.msra.mxu0 %v159
    %188 = vmatprep.subr.mxu0 0.0
    %189 = vmatpush1.msra.mxu0 %v160
    %190 = vmatprep.subr.mxu0 0.0
    %191 = vmatpush1.msra.mxu0 %v161
    %192 = vmatprep.subr.mxu0 0.0
    %193 = vmatpush1.msra.mxu0 %v162
    %194 = vmatprep.subr.mxu0 0.0
    %195 = vmatpush1.msra.mxu0 %v163
    %196 = vmatprep.subr.mxu0 0.0
    %197 = vmatpush1.msra.mxu0 %v164
    %198 = vmatprep.subr.mxu0 0.0
    %199 = vmatpush1.msra.mxu0 %v165
    %200 = vmatprep.subr.mxu0 0.0
    %201 = vmatpush1.msra.mxu0 %v166
    %202 = vmatprep.subr.mxu0 0.0
    %203 = vmatpush1.msra.mxu0 %v167
    %204 = vmatprep.subr.mxu0 0.0
    %205 = vmatpush1.msra.mxu0 %v168
    %206 = vmatprep.subr.mxu0 0.0
    %207 = vmatpush1.msra.mxu0 %v169
    %208 = vmatprep.subr.mxu0 0.0
    %209 = vmatpush1.msra.mxu0 %v170
    %210 = vmatprep.subr.mxu0 0.0
    %211 = vmatpush1.msra.mxu0 0.0
    %212 = vmatprep.subr.mxu0 0.0
    %213 = vmatpush1.msra.mxu0 0.0
    %214 = vmatprep.subr.mxu0 0.0
    %215 = vmatpush1.msra.mxu0 0.0
    %216 = vmatprep.subr.mxu0 0.0
    %217 = vmatpush1.msra.mxu0 0.0
    %218 = vmatprep.subr.mxu0 0.0
    %219 = vmatpush1.msra.mxu0 0.0
    %220 = vmatprep.subr.mxu0 0.0
    %221 = vmatpush1.msra.mxu0 0.0
    %222 = vmatprep.subr.mxu0 0.0
    %223 = vmatpush1.msra.mxu0 0.0
    %224 = vmatprep.subr.mxu0 0.0
    %225 = vmatpush1.msra.mxu0 0.0
    %226 = vmatprep.subr.mxu0 0.0
    %227 = vmatpush1.msra.mxu0 0.0
    %228 = vmatprep.subr.mxu0 0.0
    %229 = vmatpush1.msra.mxu0 0.0
    %230 = vmatprep.subr.mxu0 0.0
    %231 = vmatpush1.msra.mxu0 0.0
    %232 = vmatprep.subr.mxu0 0.0
    %233 = vmatpush1.msra.mxu0 0.0
    %234 = vmatprep.subr.mxu0 0.0
    %235 = vmatpush1.msra.mxu0 0.0
    %236 = vmatprep.subr.mxu0 0.0
    %237 = vmatpush1.msra.mxu0 0.0
    %238 = vmatprep.subr.mxu0 0.0
    %239 = vmatpush1.msra.mxu0 0.0
    %240 = vmatprep.subr.mxu0 0.0
    %241 = vmatpush1.msra.mxu0 0.0
    %242 = vmatprep.mubr.f32.mxu0 0.0
    %243 = vmatmul.mubr.f32.gmra.mrb[0].mxu0 %v154
    %v244 = vpop.f32.mrb[0].mxu0
    %v245 = vadd.f32 %v176, %v244
    %v246 = vpop.f32.mrb[0].mxu0
    %247 = vdwg.mxu0
    %v248 = vmax.f32 %v245, 0.0
    %249 = vst [vmem:[#allocation9] sm:$0xff] %v248
    // Predicated region
    $region38: #{tpu_custom_call.1} parent=1 // pred_check
      _
    $region39: #{tpu_custom_call.1} parent=1 // pred_check_branch
      %251 = sbr.rel (0) target = $region41
    $region40: #{tpu_custom_call.1} parent=1 // pred_region
      %s253 = ssub.s32 128, 128
      %254 = vsyncadd [#allocation5], %s253
      %s256 = sshll.u32 [#allocation9], 4
      %s257 = int_to_ptr.vmem [resolvable:$true] %s256
      %259 = dma.vmem_to_hbm [thread:$0]  %s257, 128, %s5, [#allocation5]
    $region41: #{tpu_custom_call.1} parent=1 // pred_fallthru
      _
    // Predicated region
    $region42: #{tpu_custom_call.1} parent=1 // pred_check
      _
    $region43: #{tpu_custom_call.1} parent=1 // pred_check_branch
      %261 = sbr.rel (0) target = $region45
    $region44: #{tpu_custom_call.1} parent=1 // pred_region
      %262 = dma.done [#allocation5], 128
    $region45: #{tpu_custom_call.1} parent=1 // pred_fallthru
      _
    %263 = vsyncpa [#allocation4], 1
    %264 = vsyncpa [#allocation7], 1
    %265 = vsyncpa [#allocation5], 1

</llo_original>
